<compile_context>
chip_gen: v6e
topology: v6e:2x2x1
jax: 0.10.0
libtpu: 0.0.40
codegen_flags: <defaults>
</compile_context>

<pallas_src>
import functools

import jax
import jax.numpy as jnp
from jax.experimental import pallas as pl
from jax.experimental.pallas import tpu as pltpu

_VMEM_LIMIT_BYTES = 32 * 1024 * 1024          # safe on v5e/v6e/v7x
_TARGET_BLOCK_BYTES = 2 * 1024 * 1024         # ~2 MiB blocks; x4 for dbl-buffer in+out


# --------------------------------------------------------------------------
# Pass 1: gate  (mean over L  ->  Linear -> ReLU -> Linear -> Sigmoid)
# --------------------------------------------------------------------------
def _se_gate_kernel(x_ref, w1t_ref, w2t_ref, scale_ref, acc_ref, *, inv_l):
    li = pl.program_id(1)

    @pl.when(li == 0)
    def _():
        acc_ref[...] = jnp.zeros_like(acc_ref)

    # f32 accumulation of the sequence sum without materializing an f32 copy
    # of the whole (TB, TL, C) block.
    acc_ref[...] += jnp.sum(x_ref[...], axis=1, dtype=jnp.float32)   # (TB, C)

    @pl.when(li == pl.num_programs(1) - 1)
    def _():
        m = acc_ref[...] * inv_l                                     # (TB, C)
        h = jnp.dot(m, w1t_ref[...], preferred_element_type=jnp.float32)
        h = jnp.maximum(h, 0.0)                                      # (TB, H)
        s = jnp.dot(h, w2t_ref[...], preferred_element_type=jnp.float32)
        scale_ref[...] = jax.nn.sigmoid(s)                           # (TB, C)


# --------------------------------------------------------------------------
# Pass 2: elementwise scale (two layouts)
# --------------------------------------------------------------------------
def _se_scale_flat_kernel(x_ref, s_ref, o_ref):
    # x_ref / o_ref: (TB, TL*C) flattened, lane-dense.  s_ref: (TB, TL*C)
    # (scale already replicated over the TL rows and cast to x dtype).
    o_ref[...] = x_ref[...] * s_ref[...]


def _se_scale_3d_kernel(x_ref, s_ref, o_ref):
    # Fallback layout: x_ref / o_ref: (TB, TL, C); s_ref: (TB, C).
    o_ref[...] = x_ref[...] * s_ref[...][:, None, :]


# --------------------------------------------------------------------------
# Tile selection helpers (always exact divisors -> no remainder handling)
# --------------------------------------------------------------------------
def _pick_batch_tile(b, max_tile=8):
    """Batch tile; for 2-D blocks it must be a multiple of 8 or the full dim."""
    if b <= max_tile:
        return b
    t = (max_tile // 8) * 8
    while t >= 8:
        if b % t == 0:
            return t
        t -= 8
    return b  # full dim is always legal


def _pick_seq_tile(l, max_rows):
    """Sequence tile: multiple of 8 dividing L, under a row budget (or full L)."""
    if l <= max_rows:
        return l
    t = (max_rows // 8) * 8
    while t >= 8:
        if l % t == 0:
            return t
        t -= 8
    # TODO(synk): for very large L with no multiple-of-8 divisor, pad L instead.
    return l


def _pick_flat_tile(l, c, itemsize, tb, target_block_bytes, prefer_multi):
    """Rows folded per flat block: TL | L, (TL*C) % 128 == 0, under VMEM budget.

    Returns None if no lane-dense flat tiling fits (caller falls back to 3-D)."""
    budget_elems = max(target_block_bytes // (itemsize * tb), 1)
    cands = [t for t in range(1, l + 1)
             if l % t == 0 and (t * c) % 128 == 0 and t * c <= budget_elems]
    if not cands:
        # whole flat row fits -> full-dim block is legal even if not 128-aligned
        return l if l * c <= budget_elems else None
    if prefer_multi and len(cands) > 1 and cands[-1] == l:
        # keep >=2 grid steps on the parallel axis (megacore / v7x 2 TCs)
        return cands[-2]
    return cands[-1]


# --------------------------------------------------------------------------
# Wrapper
# --------------------------------------------------------------------------
def se_layer(x, w1, w2, *, target_block_bytes=_TARGET_BLOCK_BYTES):
    """x: (B, L, C); w1: (C//r, C); w2: (C, C//r) (PyTorch Linear weight layout)."""
    B, L, C = x.shape
    w1t = jnp.asarray(w1, dtype=jnp.float32).T      # (C, H)
    w2t = jnp.asarray(w2, dtype=jnp.float32).T      # (H, C)
    H = w1t.shape[1]
    itemsize = jnp.dtype(x.dtype).itemsize

    tb = _pick_batch_tile(B)
    nb = B // tb

    # ---------------- Pass 1: gate -> scale (B, C) float32 ----------------
    gate_rows = max(8, target_block_bytes // max(itemsize * tb * C, 1))
    tlg = _pick_seq_tile(L, gate_rows)
    scale = pl.pallas_call(
        functools.partial(_se_gate_kernel, inv_l=1.0 / L),
        out_shape=jax.ShapeDtypeStruct((B, C), jnp.float32),
        grid_spec=pltpu.PrefetchScalarGridSpec(
            num_scalar_prefetch=0,
            grid=(nb, L // tlg),
            in_specs=[
                pl.BlockSpec((tb, tlg, C), lambda b, l: (b, l, 0)),
                pl.BlockSpec((C, H), lambda b, l: (0, 0)),
                pl.BlockSpec((H, C), lambda b, l: (0, 0)),
            ],
            out_specs=pl.BlockSpec((tb, C), lambda b, l: (b, 0)),
            scratch_shapes=[pltpu.VMEM((tb, C), jnp.float32)],
        ),
        compiler_params=pltpu.CompilerParams(
            dimension_semantics=("parallel", "arbitrary"),
            vmem_limit_bytes=_VMEM_LIMIT_BYTES,
        ),
    )(x, w1t, w2t)

    # ---------------- Pass 2: lane-dense elementwise scale ----------------
    scale_params = pltpu.CompilerParams(
        dimension_semantics=("parallel", "parallel"),
        vmem_limit_bytes=_VMEM_LIMIT_BYTES,
    )
    tl_flat = _pick_flat_tile(L, C, itemsize, tb, target_block_bytes,
                              prefer_multi=(nb == 1))
    if tl_flat is not None:
        # Fold (L, C) -> flat so the stored block's last dim is 128-aligned
        # even when C < 128 (unmasked stores). Scale is pre-replicated over
        # the folded rows (tiny) so the kernel is a pure per-lane multiply.
        w_flat = tl_flat * C
        x_flat = x.reshape(B, L * C)
        scale_rep = jnp.tile(scale, (1, tl_flat)).astype(x.dtype)    # (B, TL*C)
        out_flat = pl.pallas_call(
            _se_scale_flat_kernel,
            out_shape=jax.ShapeDtypeStruct((B, L * C), x.dtype),
            grid_spec=pltpu.PrefetchScalarGridSpec(
                num_scalar_prefetch=0,
                grid=(nb, L // tl_flat),
                in_specs=[
                    pl.BlockSpec((tb, w_flat), lambda b, l: (b, l)),
                    pl.BlockSpec((tb, w_flat), lambda b, l: (b, 0)),
                ],
                out_specs=pl.BlockSpec((tb, w_flat), lambda b, l: (b, l)),
            ),
            compiler_params=scale_params,
        )(x_flat, scale_rep)
        return out_flat.reshape(B, L, C)

    # Fallback: (B, L, C) layout with (8-aligned) L tiles; stores may be
    # lane-masked if C % 128 != 0, but VMEM stays bounded for awkward shapes.
    tl3 = _pick_seq_tile(L, gate_rows)
    return pl.pallas_call(
        _se_scale_3d_kernel,
        out_shape=jax.ShapeDtypeStruct((B, L, C), x.dtype),
        grid_spec=pltpu.PrefetchScalarGridSpec(
            num_scalar_prefetch=0,
            grid=(nb, L // tl3),
            in_specs=[
                pl.BlockSpec((tb, tl3, C), lambda b, l: (b, l, 0)),
                pl.BlockSpec((tb, C), lambda b, l: (b, 0)),
            ],
            out_specs=pl.BlockSpec((tb, tl3, C), lambda b, l: (b, l, 0)),
        ),
        compiler_params=scale_params,
    )(x, scale.astype(x.dtype))


# --------------------------------------------------------------------------
# Pure-JAX reference mirroring the PyTorch forward
# --------------------------------------------------------------------------
def se_layer_ref(x, w1, w2):
    xt = jnp.swapaxes(x, -1, -2)                      # (B, C, L)
    y = jnp.mean(xt, axis=-1)                         # (B, C)
    y = jnp.maximum(y @ w1.T, 0.0)                    # (B, H)
    y = jax.nn.sigmoid(y @ w2.T)                      # (B, C)
    out_t = xt * y[:, :, None]                        # (B, C, L)
    return jnp.swapaxes(out_t, -1, -2)                # (B, L, C)


if __name__ == "__main__":
    B, L, C = 2, 8, 32
    reduction = 16
    H = C // reduction  # 2

    key = jax.random.PRNGKey(0)
    kx, k1, k2 = jax.random.split(key, 3)

    x = jax.random.normal(kx, (B, L, C), dtype=jnp.float32)
    # nn.Linear weight layout: (out_features, in_features), no bias.
    w1 = jax.random.normal(k1, (H, C), dtype=jnp.float32) * 0.1   # Linear(C, C//r)
    w2 = jax.random.normal(k2, (C, H), dtype=jnp.float32) * 0.1   # Linear(C//r, C)

    out = se_layer(x, w1, w2)
    out = jax.block_until_ready(out)

    ref = se_layer_ref(x, w1, w2)
    assert out.shape == (B, L, C)
    assert jnp.allclose(out, ref, atol=1e-5, rtol=1e-5), "mismatch vs reference"

    print("KERNEL_OK")
</pallas_src>

<mosaic_0001>
module attributes {stable_mosaic.version = 11 : i64} {
  func.func @_se_gate_kernel(%arg0: i32, %arg1: i32, %arg2: memref<2x8x32xf32, #tpu.memory_space<vmem>>, %arg3: memref<32x2xf32, #tpu.memory_space<vmem>>, %arg4: memref<2x32xf32, #tpu.memory_space<vmem>>, %arg5: memref<2x32xf32, #tpu.memory_space<vmem>>, %arg6: memref<2x32xf32, #tpu.memory_space<vmem>>) attributes {dimension_semantics = [#tpu.dimension_semantics<parallel>, #tpu.dimension_semantics<arbitrary>], iteration_bounds = array<i64: 1, 1>, scalar_prefetch = 0 : i64, scratch_operands = 1 : i64, tpu.core_type = #tpu.core_type<tc>, window_params = [{transform_indices = @transform_0, window_bounds = array<i64: 2, 8, 32>}, {pipeline_mode = #tpu.pipeline_mode<synchronous>, transform_indices = @transform_1, window_bounds = array<i64: 32, 2>}, {pipeline_mode = #tpu.pipeline_mode<synchronous>, transform_indices = @transform_2, window_bounds = array<i64: 2, 32>}, {transform_indices = @transform_3, window_bounds = array<i64: 2, 32>}]} {
    %c0_i32 = arith.constant 0 : i32
    %0 = arith.cmpi eq, %arg1, %c0_i32 : i32
    %1 = arith.extui %0 : i1 to i32
    %c0_i32_0 = arith.constant 0 : i32
    %2 = arith.cmpi ne, %1, %c0_i32_0 : i32
    scf.if %2 {
      %cst_9 = arith.constant 0.000000e+00 : f32
      %11 = vector.broadcast %cst_9 : f32 to vector<2x32xf32>
      %c0_10 = arith.constant 0 : index
      %c0_11 = arith.constant 0 : index
      %12 = vector.load %arg6[%c0_10, %c0_11] : memref<2x32xf32, #tpu.memory_space<vmem>>, vector<2x32xf32>
      tpu.vector_store %arg6[%c0_10, %c0_11], %11 {strides = array<i32>} : memref<2x32xf32, #tpu.memory_space<vmem>>, vector<2x32xf32>,
    } else {
    }
    %c0 = arith.constant 0 : index
    %c0_1 = arith.constant 0 : index
    %3 = vector.load %arg6[%c0, %c0_1] : memref<2x32xf32, #tpu.memory_space<vmem>>, vector<2x32xf32>
    %c0_2 = arith.constant 0 : index
    %c0_3 = arith.constant 0 : index
    %c0_4 = arith.constant 0 : index
    %4 = vector.load %arg2[%c0_2, %c0_3, %c0_4] : memref<2x8x32xf32, #tpu.memory_space<vmem>>, vector<2x8x32xf32>
    %cst = arith.constant dense<0.000000e+00> : vector<2x32xf32>
    %5 = vector.multi_reduction <add>, %4, %cst [1] : vector<2x8x32xf32> to vector<2x32xf32>
    %6 = arith.addf %3, %5 : vector<2x32xf32>
    %c0_5 = arith.constant 0 : index
    %c0_6 = arith.constant 0 : index
    %7 = vector.load %arg6[%c0_5, %c0_6] : memref<2x32xf32, #tpu.memory_space<vmem>>, vector<2x32xf32>
    tpu.vector_store %arg6[%c0_5, %c0_6], %6 {strides = array<i32>} : memref<2x32xf32, #tpu.memory_space<vmem>>, vector<2x32xf32>,
    %c0_i32_7 = arith.constant 0 : i32
    %8 = arith.cmpi eq, %arg1, %c0_i32_7 : i32
    %9 = arith.extui %8 : i1 to i32
    %c0_i32_8 = arith.constant 0 : i32
    %10 = arith.cmpi ne, %9, %c0_i32_8 : i32
    scf.if %10 {
      %c0_9 = arith.constant 0 : index
      %c0_10 = arith.constant 0 : index
      %11 = vector.load %arg6[%c0_9, %c0_10] : memref<2x32xf32, #tpu.memory_space<vmem>>, vector<2x32xf32>
      %cst_11 = arith.constant 1.250000e-01 : f32
      %12 = vector.broadcast %cst_11 : f32 to vector<2x32xf32>
      %13 = arith.mulf %11, %12 : vector<2x32xf32>
      %c0_12 = arith.constant 0 : index
      %c0_13 = arith.constant 0 : index
      %14 = vector.load %arg3[%c0_12, %c0_13] : memref<32x2xf32, #tpu.memory_space<vmem>>, vector<32x2xf32>
      %cst_14 = arith.constant dense<0.000000e+00> : vector<2x2xf32>
      %15 = tpu.matmul %13, %14, %cst_14 {dimension_numbers = #tpu.dot_dimension_numbers<[1], [0], [0], [1], [0, 0, 1, 1], [], []>} : vector<2x32xf32>, vector<32x2xf32>, vector<2x2xf32> -> vector<2x2xf32>
      %cst_15 = arith.constant 0.000000e+00 : f32
      %16 = vector.broadcast %cst_15 : f32 to vector<2x2xf32>
      %17 = arith.maximumf %15, %16 : vector<2x2xf32>
      %c0_16 = arith.constant 0 : index
      %c0_17 = arith.constant 0 : index
      %18 = vector.load %arg4[%c0_16, %c0_17] : memref<2x32xf32, #tpu.memory_space<vmem>>, vector<2x32xf32>
      %cst_18 = arith.constant dense<0.000000e+00> : vector<2x32xf32>
      %19 = tpu.matmul %17, %18, %cst_18 {dimension_numbers = #tpu.dot_dimension_numbers<[1], [0], [0], [1], [0, 0, 1, 1], [], []>} : vector<2x2xf32>, vector<2x32xf32>, vector<2x32xf32> -> vector<2x32xf32>
      %20 = arith.negf %19 : vector<2x32xf32>
      %21 = math.exp %20 : vector<2x32xf32>
      %cst_19 = arith.constant 1.000000e+00 : f32
      %22 = vector.broadcast %cst_19 : f32 to vector<2x32xf32>
      %23 = arith.addf %22, %21 : vector<2x32xf32>
      %24 = arith.divf %22, %23 : vector<2x32xf32>
      %c0_20 = arith.constant 0 : index
      %c0_21 = arith.constant 0 : index
      %25 = vector.load %arg5[%c0_20, %c0_21] : memref<2x32xf32, #tpu.memory_space<vmem>>, vector<2x32xf32>
      tpu.vector_store %arg5[%c0_20, %c0_21], %24 {strides = array<i32>} : memref<2x32xf32, #tpu.memory_space<vmem>>, vector<2x32xf32>,
    } else {
    }
    return
  }
  func.func @transform_0(%arg0: i32, %arg1: i32) -> (i32, i32, i32) {
    %c0_i32 = arith.constant 0 : i32
    %c0_i32_0 = arith.constant 0 : i32
    return %arg0, %arg1, %c0_i32 : i32, i32, i32
  }
  func.func @transform_1(%arg0: i32, %arg1: i32) -> (i32, i32) {
    %c0_i32 = arith.constant 0 : i32
    %c0_i32_0 = arith.constant 0 : i32
    %c0_i32_1 = arith.constant 0 : i32
    return %c0_i32, %c0_i32_0 : i32, i32
  }
  func.func @transform_2(%arg0: i32, %arg1: i32) -> (i32, i32) {
    %c0_i32 = arith.constant 0 : i32
    %c0_i32_0 = arith.constant 0 : i32
    %c0_i32_1 = arith.constant 0 : i32
    return %c0_i32, %c0_i32_0 : i32, i32
  }
  func.func @transform_3(%arg0: i32, %arg1: i32) -> (i32, i32) {
    %c0_i32 = arith.constant 0 : i32
    %c0_i32_0 = arith.constant 0 : i32
    return %arg0, %c0_i32 : i32, i32
  }
}

</mosaic_0001>

<llo_original>
// kernel: tpu_custom_call.1
$region0: #{tpu_custom_call.1}
  #allocation0 [shape = 'u32[]', space=smem, size = 0x4, offset = 0x4, fixed_abs, tag = 'smem constant byte address 0x4 - core index']
  #allocation1 [shape = 'u32[144,128]{1,0:T(1,128)}', space=vmem, size = 0x12000, scoped, tag = 'internal scratch']
  #allocation2 [shape = 'f32[2,32]{1,0:T(2,128)}', space=vmem, size = 0x400, scoped, tag = 'scratch operand']
  %s0 = inlined_call_operand.vmem [shape: f32[2,8,32], index: 0, kind: input, shape index: {}]
  %s1 = inlined_call_operand.vmem [shape: f32[32,2], index: 1, kind: input, shape index: {}]
  %s2 = inlined_call_operand.vmem [shape: f32[2,32], index: 2, kind: input, shape index: {}]
  %s3 = inlined_call_operand.hbm [shape: f32[2,32], index: 3, kind: output, shape index: {}]
  %s4 = sld [smem:[#allocation0]]
  $region30: #{tpu_custom_call.1} parent=0
    _
  %s6 = ssub.s32 1, %s4
  %s7 = scalar_select 0, %s6, %s4
  $region1: #{tpu_custom_call.1} parent=0
    #allocation3 [shape = 'u8[1024]{0}', space=vmem, size = 0x400, scoped, tag = 'output window, operand 0, single buffered']
    #allocation4 [shape = 's32[1]{0}', space=sflag, size = 0x4, scoped, tag = 'scoped memory for tpu_custom_call.1']
    %8 = vsyncpa [#allocation4], 0
    // Predicated region
    $region2: #{tpu_custom_call.1} parent=1 // pred_check
      _
    $region3: #{tpu_custom_call.1} parent=1 // pred_check_branch
      %10 = sbr.rel (0) target = $region5
    $region4: #{tpu_custom_call.1} parent=1 // pred_region
      _
    $region5: #{tpu_custom_call.1} parent=1 // pred_fallthru
      _
    // Predicated region
    $region6: #{tpu_custom_call.1} parent=1 // pred_check
      _
    $region7: #{tpu_custom_call.1} parent=1 // pred_check_branch
      %12 = sbr.rel (0) target = $region9
    $region8: #{tpu_custom_call.1} parent=1 // pred_region
      _
    $region9: #{tpu_custom_call.1} parent=1 // pred_fallthru
      _
    // Predicated region
    $region10: #{tpu_custom_call.1} parent=1 // pred_check
      _
    $region11: #{tpu_custom_call.1} parent=1 // pred_check_branch
      %14 = sbr.rel (0) target = $region13
    $region12: #{tpu_custom_call.1} parent=1 // pred_region
      _
    $region13: #{tpu_custom_call.1} parent=1 // pred_fallthru
      _
    %p15 = scmp.eq.s32.totalorder 0, 0
    // Predicated region
    $region14: #{tpu_custom_call.1} parent=1 // pred_check
      %p16 = pneg %p15
    $region15: #{tpu_custom_call.1} parent=1 // pred_check_branch
      %18 = sbr.rel (%p16) target = $region17
    $region16: #{tpu_custom_call.1} parent=1 // pred_region
      %vm19 = vcmask 254976
      %20 = vst.msk [vmem:[#allocation2] sm:$0x3] %vm19, 0.0
    $region17: #{tpu_custom_call.1} parent=1 // pred_fallthru
      _
    %v21 = vld [vmem:[#allocation2] sm:$0x3]
    %v22 = vld [vmem:[%s0] sm:$0xff]
    %v23 = vld [vmem:[%s0 + $0x8] sm:$0xff]
    %vm24 = vcmask 261120
    %v25 = vsel %vm24, %v22, 0.0
    %v26 = vrot.slane %v25, 4
    %v27 = vadd.f32 %v25, %v26
    %v28 = vrot.slane %v27, 2
    %v29 = vadd.f32 %v27, %v28
    %v30 = vrot.slane %v29, 1
    %v31 = vadd.f32 %v29, %v30
    %v32 = vsel %vm24, %v23, 0.0
    %v33 = vrot.slane %v32, 4
    %v34 = vadd.f32 %v32, %v33
    %v35 = vrot.slane %v34, 2
    %v36 = vadd.f32 %v34, %v35
    %v37 = vrot.slane %v36, 1
    %v38 = vadd.f32 %v36, %v37
    %vm41 = vcmask 1041409
    %v42 = vsel %vm41, %v38, %v31
    %v44 = vadd.f32 %v21, %v42
    %vm45 = vcmask 254976
    %46 = vst.msk [vmem:[#allocation2] sm:$0x3] %vm45, %v44
    // Predicated region
    $region18: #{tpu_custom_call.1} parent=1 // pred_check
      %p47 = pneg %p15
    $region19: #{tpu_custom_call.1} parent=1 // pred_check_branch
      %49 = sbr.rel (%p47) target = $region21
    $region20: #{tpu_custom_call.1} parent=1 // pred_region
      %v50 = vld [vmem:[#allocation2] sm:$0x3]
      %v51 = vmul.f32 %v50, 0.125
      %v52 = vld [vmem:[%s1] sm:$0xff]
      %v53 = vld [vmem:[%s1 + $0x8] sm:$0xff]
      %v54 = vld [vmem:[%s1 + $0x10] sm:$0xff]
      %v55 = vld [vmem:[%s1 + $0x18] sm:$0xff]
      %v57 = vsel %vm24, %v51, 0
      %59 = vmatprep.subr.mxu0 0.0
      %60 = vmatpush1.msra.mxu0 0.0
      %61 = vmatprep.subr.mxu0 0.0
      %62 = vmatpush1.msra.mxu0 0.0
      %63 = vmatprep.subr.mxu0 0.0
      %64 = vmatpush1.msra.mxu0 0.0
      %65 = vmatprep.subr.mxu0 0.0
      %66 = vmatpush1.msra.mxu0 0.0
      %67 = vmatprep.subr.mxu0 0.0
      %68 = vmatpush1.msra.mxu0 0.0
      %69 = vmatprep.subr.mxu0 0.0
      %70 = vmatpush1.msra.mxu0 0.0
      %71 = vmatprep.subr.mxu0 0.0
      %72 = vmatpush1.msra.mxu0 0.0
      %73 = vmatprep.subr.mxu0 0.0
      %74 = vmatpush1.msra.mxu0 0.0
      %75 = vmatprep.subr.mxu0 0.0
      %76 = vmatpush1.msra.mxu0 0.0
      %77 = vmatprep.subr.mxu0 0.0
      %78 = vmatpush1.msra.mxu0 0.0
      %79 = vmatprep.subr.mxu0 0.0
      %80 = vmatpush1.msra.mxu0 0.0
      %81 = vmatprep.subr.mxu0 0.0
      %82 = vmatpush1.msra.mxu0 0.0
      %83 = vmatprep.subr.mxu0 0.0
      %84 = vmatpush1.msra.mxu0 %v55
      %85 = vmatprep.subr.mxu0 0.0
      %86 = vmatpush1.msra.mxu0 %v54
      %87 = vmatprep.subr.mxu0 0.0
      %88 = vmatpush1.msra.mxu0 %v53
      %89 = vmatprep.subr.mxu0 0.0
      %90 = vmatpush1.msra.mxu0 %v52
      %91 = vmatprep.subr.mxu0 0.0
      %92 = vmatpush2.msra.mxu0 0.0
      %93 = vmatprep.subr.mxu0 0.0
      %94 = vmatpush2.msra.mxu0 0.0
      %95 = vmatprep.subr.mxu0 0.0
      %96 = vmatpush2.msra.mxu0 0.0
      %97 = vmatprep.subr.mxu0 0.0
      %98 = vmatpush2.msra.mxu0 0.0
      %99 = vmatprep.subr.mxu0 0.0
      %100 = vmatpush2.msra.mxu0 0.0
      %101 = vmatprep.subr.mxu0 0.0
      %102 = vmatpush2.msra.mxu0 0.0
      %103 = vmatprep.subr.mxu0 0.0
      %104 = vmatpush2.msra.mxu0 0.0
      %105 = vmatprep.subr.mxu0 0.0
      %106 = vmatpush2.msra.mxu0 0.0
      %107 = vmatprep.subr.mxu0 0.0
      %108 = vmatpush2.msra.mxu0 0.0
      %109 = vmatprep.subr.mxu0 0.0
      %110 = vmatpush2.msra.mxu0 0.0
      %111 = vmatprep.subr.mxu0 0.0
      %112 = vmatpush2.msra.mxu0 0.0
      %113 = vmatprep.subr.mxu0 0.0
      %114 = vmatpush2.msra.mxu0 0.0
      %115 = vmatprep.subr.mxu0 0.0
      %116 = vmatpush2.msra.mxu0 0.0
      %117 = vmatprep.subr.mxu0 0.0
      %118 = vmatpush2.msra.mxu0 0.0
      %119 = vmatprep.subr.mxu0 0.0
      %120 = vmatpush2.msra.mxu0 0.0
      %121 = vmatprep.subr.mxu0 0.0
      %122 = vmatpush2.msra.mxu0 0.0
      %123 = vmatprep.mubr.f32.mxu0 0.0
      %124 = vmatmul.mubr.f32.gmra.mxu0 %v57
      %v125 = vpop.f32.mrf.mxu0
      %v126 = vadd.f32 0.0, %v125
      %v127 = vpop.f32.mrf.mxu0
      %128 = vdwg.mxu0
      %v129 = vmax.f32 %v126, 0.0
      %v130 = vld [vmem:[%s2] sm:$0x3]
      %vm131 = vcmask 15360
      %v133 = vsel %vm131, %v129, 0
      %vm135 = vcmask 1041408
      %v137 = vsel %vm135, %v130, 0
      %139 = vmatprep.subr.mxu0 0.0
      %140 = vmatpush1.msra.mxu0 0.0
      %141 = vmatprep.subr.mxu0 0.0
      %142 = vmatpush1.msra.mxu0 0.0
      %143 = vmatprep.subr.mxu0 0.0
      %144 = vmatpush1.msra.mxu0 0.0
      %145 = vmatprep.subr.mxu0 0.0
      %146 = vmatpush1.msra.mxu0 0.0
      %147 = vmatprep.subr.mxu0 0.0
      %148 = vmatpush1.msra.mxu0 0.0
      %149 = vmatprep.subr.mxu0 0.0
      %150 = vmatpush1.msra.mxu0 0.0
      %151 = vmatprep.subr.mxu0 0.0
      %152 = vmatpush1.msra.mxu0 0.0
      %153 = vmatprep.subr.mxu0 0.0
      %154 = vmatpush1.msra.mxu0 0.0
      %155 = vmatprep.subr.mxu0 0.0
      %156 = vmatpush1.msra.mxu0 0.0
      %157 = vmatprep.subr.mxu0 0.0
      %158 = vmatpush1.msra.mxu0 0.0
      %159 = vmatprep.subr.mxu0 0.0
      %160 = vmatpush1.msra.mxu0 0.0
      %161 = vmatprep.subr.mxu0 0.0
      %162 = vmatpush1.msra.mxu0 0.0
      %163 = vmatprep.subr.mxu0 0.0
      %164 = vmatpush1.msra.mxu0 0.0
      %165 = vmatprep.subr.mxu0 0.0
      %166 = vmatpush1.msra.mxu0 0.0
      %167 = vmatprep.subr.mxu0 0.0
      %168 = vmatpush1.msra.mxu0 0.0
      %169 = vmatprep.subr.mxu0 0.0
      %170 = vmatpush1.msra.mxu0 %v137
      %171 = vmatprep.subr.mxu0 0.0
      %172 = vmatpush2.msra.mxu0 0.0
      %173 = vmatprep.subr.mxu0 0.0
      %174 = vmatpush2.msra.mxu0 0.0
      %175 = vmatprep.subr.mxu0 0.0
      %176 = vmatpush2.msra.mxu0 0.0
      %177 = vmatprep.subr.mxu0 0.0
      %178 = vmatpush2.msra.mxu0 0.0
      %179 = vmatprep.subr.mxu0 0.0
      %180 = vmatpush2.msra.mxu0 0.0
      %181 = vmatprep.subr.mxu0 0.0
      %182 = vmatpush2.msra.mxu0 0.0
      %183 = vmatprep.subr.mxu0 0.0
      %184 = vmatpush2.msra.mxu0 0.0
      %185 = vmatprep.subr.mxu0 0.0
      %186 = vmatpush2.msra.mxu0 0.0
      %187 = vmatprep.subr.mxu0 0.0
      %188 = vmatpush2.msra.mxu0 0.0
      %189 = vmatprep.subr.mxu0 0.0
      %190 = vmatpush2.msra.mxu0 0.0
      %191 = vmatprep.subr.mxu0 0.0
      %192 = vmatpush2.msra.mxu0 0.0
      %193 = vmatprep.subr.mxu0 0.0
      %194 = vmatpush2.msra.mxu0 0.0
      %195 = vmatprep.subr.mxu0 0.0
      %196 = vmatpush2.msra.mxu0 0.0
      %197 = vmatprep.subr.mxu0 0.0
      %198 = vmatpush2.msra.mxu0 0.0
      %199 = vmatprep.subr.mxu0 0.0
      %200 = vmatpush2.msra.mxu0 0.0
      %201 = vmatprep.subr.mxu0 0.0
      %202 = vmatpush2.msra.mxu0 0.0
      %203 = vmatprep.mubr.f32.mxu0 0.0
      %204 = vmatmul.mubr.f32.gmra.mxu0 %v133
      %v205 = vpop.f32.mrf.mxu0
      %v206 = vadd.f32 0.0, %v205
      %v207 = vpop.f32.mrf.mxu0
      %208 = vdwg.mxu0
      %v209 = vxor.u32 %v206, 2147483648
      %v210 = vmul.f32 %v209, 1.442695
      %v211 = vpow.pop %v210
      %v212 = vadd.f32 %v211, 1.0
      %v213 = vrcp.pop %v212
      %v214 = vmul.f32 1.0, %v213
      %215 = vst.msk [vmem:[#allocation3] sm:$0x3] %vm45, %v214
    $region21: #{tpu_custom_call.1} parent=1 // pred_fallthru
      _
    // Predicated region
    $region22: #{tpu_custom_call.1} parent=1 // pred_check
      _
    $region23: #{tpu_custom_call.1} parent=1 // pred_check_branch
      %217 = sbr.rel (0) target = $region25
    $region24: #{tpu_custom_call.1} parent=1 // pred_region
      %s219 = ssub.s32 32, 32
      %220 = vsyncadd [#allocation4], %s219
      %s222 = sshll.u32 [#allocation3], 4
      %s223 = int_to_ptr.vmem [resolvable:$true] %s222
      %225 = dma.vmem_to_hbm [thread:$0]  %s223, 32, %s3, [#allocation4]
    $region25: #{tpu_custom_call.1} parent=1 // pred_fallthru
      _
    // Predicated region
    $region26: #{tpu_custom_call.1} parent=1 // pred_check
      _
    $region27: #{tpu_custom_call.1} parent=1 // pred_check_branch
      %227 = sbr.rel (0) target = $region29
    $region28: #{tpu_custom_call.1} parent=1 // pred_region
      %228 = dma.done [#allocation4], 32
    $region29: #{tpu_custom_call.1} parent=1 // pred_fallthru
      _
    %229 = vsyncpa [#allocation4], 1

</llo_original>
